<compile_context>
chip_gen: v7x
topology: tpu7x:2x2x1
jax: 0.10.0
libtpu: 0.0.40
codegen_flags: <defaults>
</compile_context>

<pallas_src>
import numpy as np
import jax
import jax.numpy as jnp
from jax.experimental import pallas as pl
from jax.experimental.pallas import tpu as pltpu

DEFAULT_MAX_Z = 86


def _round_up(x, m):
    return ((x + m - 1) // m) * m


# ----------------------------------------------------------------------------
# Pallas kernel: fused (gather + dense + embedding-add) == one one-hot matmul
# ----------------------------------------------------------------------------
def nuclear_embedding_kernel(z_ref, table_ref, o_ref):
    """
    z_ref     : (TN, 1)  int32   atomic numbers for this row tile
    table_ref : (ZP, FP) float32 fused table = elec_config @ m_weight.T + emb
    o_ref     : (TN, FP) float32 output tile
    """
    tn = z_ref.shape[0]
    zp = table_ref.shape[0]

    z = z_ref[...]                                                 # (TN, 1)
    ids = jax.lax.broadcasted_iota(jnp.int32, (tn, zp), 1)         # (TN, ZP)
    one_hot = (ids == z).astype(jnp.float32)                       # exact 0/1

    # Single full-fill MXU matmul: exact row gather of the fused table.
    o_ref[...] = jnp.dot(one_hot, table_ref[...],
                         preferred_element_type=jnp.float32)


# ----------------------------------------------------------------------------
# One-time setup (hoisted out of the per-forward hot path)
# ----------------------------------------------------------------------------
def prepare_fused_table(elec_config, emb_table, m_weight):
    """
    elec_config : (max_z + 1, 20) float32
    emb_table   : (max_z, F)      float32 (row 0 is the padding row)
    m_weight    : (F, 20)         float32 (nn.Linear weight, no bias)

    Returns (fused_table (ZP, FP) float32, F).
    Valid atomic numbers are 0 <= z <= max_z - 1 (matches nn.Embedding(max_z));
    out-of-range z hit zero-padded rows and silently yield zeros.
    """
    n_elec, _ = elec_config.shape
    n_emb, F = emb_table.shape
    ZP = _round_up(max(n_elec, n_emb), 128)     # one-hot width (lane-dense)
    FP = _round_up(F, 128)                      # feature width  (lane-dense)

    fused_valid = (elec_config[:n_emb].astype(jnp.float32)
                   @ m_weight.astype(jnp.float32).T
                   + emb_table.astype(jnp.float32))                # (n_emb, F)
    fused = jnp.zeros((ZP, FP), jnp.float32).at[:n_emb, :F].set(fused_valid)
    return fused, F


# ----------------------------------------------------------------------------
# Hot-path wrapper
# ----------------------------------------------------------------------------
def nuclear_embedding_apply(z, fused_table, feat_dim, *,
                            row_tile=1024, min_grid_steps=4):
    """
    z           : (N,) int   atomic numbers, must satisfy 0 <= z <= max_z - 1
    fused_table : (ZP, FP) float32  from prepare_fused_table (setup-time)
    returns     : (N, feat_dim) float32
    """
    N = int(z.shape[0])
    ZP, FP = fused_table.shape

    # Tile sizing: tiles as large as possible (amortize per-step overhead),
    # but keep >= min_grid_steps steps for large N so the "parallel" grid
    # axis shards across both v7x TensorCores (irrelevant on 1-TC v5e/v6e).
    if N <= 8:
        TN = 8
    else:
        target = _round_up(-(-N // min_grid_steps), 256)
        TN = max(8, min(row_tile, target, _round_up(N, 8)))
    NP = _round_up(N, TN)

    # Only z padding remains on the per-call path (padding rows -> z = 0).
    if NP == N:
        z_p = z.astype(jnp.int32).reshape(NP, 1)
    else:
        z_p = jnp.zeros((NP, 1), jnp.int32).at[:N, 0].set(z.astype(jnp.int32))

    # NOTE: for very large F (FP >= 1024) on v7x one could single-buffer the
    # constant-index table input (pipeline_mode=pl.Buffered(1)); at F=128 the
    # double-buffered 64 KB table is negligible, so keep the default.
    out = pl.pallas_call(
        nuclear_embedding_kernel,
        out_shape=jax.ShapeDtypeStruct((NP, FP), jnp.float32),
        grid=(NP // TN,),
        in_specs=[
            pl.BlockSpec((TN, 1), lambda i: (i, 0)),     # per-tile atomic numbers
            pl.BlockSpec((ZP, FP), lambda i: (0, 0)),    # fused table: VMEM-resident
        ],
        out_specs=pl.BlockSpec((TN, FP), lambda i: (i, 0)),
        compiler_params=pltpu.CompilerParams(
            dimension_semantics=("parallel",)),
    )(z_p, fused_table)

    if NP == N and FP == feat_dim:
        return out                       # no extra HBM copy on the hot path
    return out[:N, :feat_dim]


# ----------------------------------------------------------------------------
# Parameters (deterministic synthetic init)
# ----------------------------------------------------------------------------
def get_elec_config_synthetic(max_z):
    # TODO(synk): the ELEC_CONFIG element data table from nff was not provided;
    # a deterministic synthetic stand-in with the same shape (max_z+1, 20),
    # [0, 1] normalization, first column z / max_z and row 0 = zeros is used.
    zz = np.arange(max_z + 1, dtype=np.float32)[:, None]
    cap = np.array([max_z] + [2.0 * (k % 4 + 1) for k in range(19)],
                   dtype=np.float32)[None, :]
    start = np.concatenate([[0.0], np.cumsum(cap[0, 1:])])[None, :]
    filled = np.clip(zz - start, 0.0, cap)
    return jnp.asarray(filled / cap, dtype=jnp.float32)


def init_params(key, feat_dim, max_z=DEFAULT_MAX_Z):
    k_emb, k_w = jax.random.split(key, 2)
    elec_config = get_elec_config_synthetic(max_z)                 # (max_z+1, 20)
    emb = 0.1 * jax.random.normal(k_emb, (max_z, feat_dim), jnp.float32)
    emb = emb.at[0].set(0.0)                                       # padding_idx = 0
    # NOTE: the reference initializes m_mat with zeros (zeros_initializer);
    # a small random weight is used here so the Dense path is exercised
    # numerically.  Use zeros to reproduce the untrained module exactly.
    m_weight = 0.05 * jax.random.normal(k_w, (feat_dim, 20), jnp.float32)
    return dict(elec_config=elec_config, emb=emb, m_weight=m_weight)


# ----------------------------------------------------------------------------
# Demo
# ----------------------------------------------------------------------------
if __name__ == "__main__":
    feat_dim = 128
    max_z = DEFAULT_MAX_Z
    n_atoms = 24

    key = jax.random.PRNGKey(0)
    k_par, k_z = jax.random.split(key, 2)
    params = init_params(k_par, feat_dim, max_z)

    # One-time setup (would live in module init in a real model).
    fused_table, F = prepare_fused_table(params['elec_config'], params['emb'],
                                         params['m_weight'])
    fused_table = jax.block_until_ready(fused_table)

    # atomic numbers in [1, max_z - 1] (0 is the padding index)
    z = jax.random.randint(k_z, (n_atoms,), 1, max_z, dtype=jnp.int32)

    e_z = nuclear_embedding_apply(z, fused_table, F)
    jax.block_until_ready(e_z)

    # pure-JAX reference (same math as the PyTorch forward)
    ref = params['elec_config'][z] @ params['m_weight'].T + params['emb'][z]

    assert e_z.shape == (n_atoms, feat_dim)
    assert bool(jnp.all(jnp.isfinite(e_z)))
    assert float(jnp.max(jnp.abs(e_z - ref))) < 1e-4
    print("KERNEL_OK")
</pallas_src>

<mosaic_0001>
module attributes {stable_mosaic.version = 11 : i64} {
  func.func @nuclear_embedding_kernel(%arg0: i32, %arg1: memref<24x1xi32, #tpu.memory_space<vmem>>, %arg2: memref<128x128xf32, #tpu.memory_space<vmem>>, %arg3: memref<24x128xf32, #tpu.memory_space<vmem>>) attributes {dimension_semantics = [#tpu.dimension_semantics<parallel>], iteration_bounds = array<i64: 1>, scalar_prefetch = 0 : i64, scratch_operands = 0 : i64, tpu.core_type = #tpu.core_type<tc>, window_params = [{transform_indices = @transform_0, window_bounds = array<i64: 24, 1>}, {pipeline_mode = #tpu.pipeline_mode<synchronous>, transform_indices = @transform_1, window_bounds = array<i64: 128, 128>}, {transform_indices = @transform_2, window_bounds = array<i64: 24, 128>}]} {
    %c0 = arith.constant 0 : index
    %c0_0 = arith.constant 0 : index
    %0 = vector.load %arg1[%c0, %c0_0] : memref<24x1xi32, #tpu.memory_space<vmem>>, vector<24x1xi32>
    %1 = tpu.iota {dimensions = array<i32: 1>} : vector<24x128xi32>
    %2 = vector.broadcast %0 : vector<24x1xi32> to vector<24x128xi32>
    %3 = arith.cmpi eq, %1, %2 : vector<24x128xi32>
    %4 = arith.extui %3 : vector<24x128xi1> to vector<24x128xi32>
    %5 = arith.sitofp %4 : vector<24x128xi32> to vector<24x128xf32>
    %c0_1 = arith.constant 0 : index
    %c0_2 = arith.constant 0 : index
    %6 = vector.load %arg2[%c0_1, %c0_2] : memref<128x128xf32, #tpu.memory_space<vmem>>, vector<128x128xf32>
    %cst = arith.constant dense<0.000000e+00> : vector<24x128xf32>
    %7 = tpu.matmul %5, %6, %cst {dimension_numbers = #tpu.dot_dimension_numbers<[1], [0], [0], [1], [0, 0, 1, 1], [], []>} : vector<24x128xf32>, vector<128x128xf32>, vector<24x128xf32> -> vector<24x128xf32>
    %c0_3 = arith.constant 0 : index
    %c0_4 = arith.constant 0 : index
    %8 = vector.load %arg3[%c0_3, %c0_4] : memref<24x128xf32, #tpu.memory_space<vmem>>, vector<24x128xf32>
    tpu.vector_store %arg3[%c0_3, %c0_4], %7 {strides = array<i32>} : memref<24x128xf32, #tpu.memory_space<vmem>>, vector<24x128xf32>,
    return
  }
  func.func @transform_0(%arg0: i32) -> (i32, i32) {
    %c0_i32 = arith.constant 0 : i32
    %c0_i32_0 = arith.constant 0 : i32
    return %arg0, %c0_i32 : i32, i32
  }
  func.func @transform_1(%arg0: i32) -> (i32, i32) {
    %c0_i32 = arith.constant 0 : i32
    %c0_i32_0 = arith.constant 0 : i32
    %c0_i32_1 = arith.constant 0 : i32
    return %c0_i32, %c0_i32_0 : i32, i32
  }
  func.func @transform_2(%arg0: i32) -> (i32, i32) {
    %c0_i32 = arith.constant 0 : i32
    %c0_i32_0 = arith.constant 0 : i32
    return %arg0, %c0_i32 : i32, i32
  }
}

</mosaic_0001>

<llo_original>
// kernel: tpu_custom_call.1
$region0: #{tpu_custom_call.1}
  #allocation0 [shape = 'u32[]', space=smem, size = 0x4, offset = 0x4, fixed_abs, tag = 'smem constant byte address 0x4 - core index']
  #allocation1 [shape = 'u32[144,128]{1,0:T(1,128)}', space=vmem, size = 0x12000, scoped, tag = 'internal scratch']
  %s0 = inlined_call_operand.vmem [shape: s32[24,1], index: 0, kind: input, shape index: {}]
  %s1 = inlined_call_operand.hbm [shape: f32[128,128], index: 1, kind: input, shape index: {}]
  %s2 = inlined_call_operand.hbm [shape: f32[24,128], index: 2, kind: output, shape index: {}]
  %s3 = sld [smem:[#allocation0]]
  $region22: #{tpu_custom_call.1} parent=0
    _
  %s5 = ssub.s32 1, %s3
  %s6 = scalar_select 0, %s5, %s3
  $region1: #{tpu_custom_call.1} parent=0
    #allocation2 [shape = 'u8[65536]{0}', space=vmem, size = 0x10000, scoped, tag = 'input window, operand 1, single buffered']
    #allocation3 [shape = 's32[1]{0}', space=sflag, size = 0x4, scoped, tag = 'scoped memory for tpu_custom_call.1']
    #allocation4 [shape = 's32[1]{0}', space=sflag, size = 0x4, scoped, tag = 'scoped memory for tpu_custom_call.1']
    #allocation5 [shape = 'u8[12288]{0}', space=vmem, size = 0x3000, scoped, tag = 'output window, operand 0, single buffered']
    %7 = vsyncpa [#allocation3], 0
    %8 = vsyncpa [#allocation4], 0
    // Predicated region
    $region2: #{tpu_custom_call.1} parent=1 // pred_check
      _
    $region3: #{tpu_custom_call.1} parent=1 // pred_check_branch
      %10 = sbr.rel (0) target = $region5
    $region4: #{tpu_custom_call.1} parent=1 // pred_region
      _
    $region5: #{tpu_custom_call.1} parent=1 // pred_fallthru
      _
    // Predicated region
    $region6: #{tpu_custom_call.1} parent=1 // pred_check
      _
    $region7: #{tpu_custom_call.1} parent=1 // pred_check_branch
      %12 = sbr.rel (0) target = $region9
    $region8: #{tpu_custom_call.1} parent=1 // pred_region
      %s14 = ssub.s32 2048, 2048
      %15 = vsyncadd [#allocation3], %s14
      %s16 = sshll.u32 [#allocation2], 4
      %s17 = int_to_ptr.vmem [resolvable:$true] %s16
      %22 = dma.hbm_to_vmem [thread:$0]  %s1, 2048, %s17, [#allocation3], 128, 128, 8
    $region9: #{tpu_custom_call.1} parent=1 // pred_fallthru
      _
    // Predicated region
    $region10: #{tpu_custom_call.1} parent=1 // pred_check
      _
    $region11: #{tpu_custom_call.1} parent=1 // pred_check_branch
      %24 = sbr.rel (0) target = $region13
    $region12: #{tpu_custom_call.1} parent=1 // pred_region
      %25 = dma.done [#allocation3], 2048
    $region13: #{tpu_custom_call.1} parent=1 // pred_fallthru
      _
    %v26 = vld [vmem:[%s0] sm:$0xff]
    %v27 = vld [vmem:[%s0 + $0x8] sm:$0xff]
    %v28 = vld [vmem:[%s0 + $0x10] sm:$0xff]
    %v29 = vlaneseq
    %v30 = vand.u32 %v29, 127
    %31 = vset.pattern.permute.xlu0 0
    %32 = vperm.xlu0 %31, %v26
    %v33 = vpop.permute.xlu0 %32
    %34 = vset.pattern.permute.xlu0 0
    %35 = vperm.xlu0 %34, %v27
    %v36 = vpop.permute.xlu0 %35
    %37 = vset.pattern.permute.xlu0 0
    %38 = vperm.xlu0 %37, %v28
    %v39 = vpop.permute.xlu0 %38
    %vm40 = vcmp.eq.s32.totalorder %v30, %v33
    %vm41 = vcmp.eq.s32.totalorder %v30, %v36
    %vm42 = vcmp.eq.s32.totalorder %v30, %v39
    %v43 = vsel %vm40, 1, 0
    %v44 = vsel %vm41, 1, 0
    %v45 = vsel %vm42, 1, 0
    %v46 = vcvt.s32.f32 %v43
    %v47 = vcvt.s32.f32 %v44
    %v48 = vcvt.s32.f32 %v45
    %v49 = vld [vmem:[#allocation2] sm:$0xff]
    %v50 = vld [vmem:[#allocation2 + $0x8] sm:$0xff]
    %v51 = vld [vmem:[#allocation2 + $0x10] sm:$0xff]
    %v52 = vld [vmem:[#allocation2 + $0x18] sm:$0xff]
    %v53 = vld [vmem:[#allocation2 + $0x20] sm:$0xff]
    %v54 = vld [vmem:[#allocation2 + $0x28] sm:$0xff]
    %v55 = vld [vmem:[#allocation2 + $0x30] sm:$0xff]
    %v56 = vld [vmem:[#allocation2 + $0x38] sm:$0xff]
    %v57 = vld [vmem:[#allocation2 + $0x40] sm:$0xff]
    %v58 = vld [vmem:[#allocation2 + $0x48] sm:$0xff]
    %v59 = vld [vmem:[#allocation2 + $0x50] sm:$0xff]
    %v60 = vld [vmem:[#allocation2 + $0x58] sm:$0xff]
    %v61 = vld [vmem:[#allocation2 + $0x60] sm:$0xff]
    %v62 = vld [vmem:[#allocation2 + $0x68] sm:$0xff]
    %v63 = vld [vmem:[#allocation2 + $0x70] sm:$0xff]
    %v64 = vld [vmem:[#allocation2 + $0x78] sm:$0xff]
    %65 = vmatprep.subr.mxu0 0.0
    %66 = vmatpush1.msra.mxu0 %v49
    %67 = vmatprep.subr.mxu0 0.0
    %68 = vmatpush1.msra.mxu0 %v50
    %69 = vmatprep.subr.mxu0 0.0
    %70 = vmatpush1.msra.mxu0 %v51
    %71 = vmatprep.subr.mxu0 0.0
    %72 = vmatpush1.msra.mxu0 %v52
    %73 = vmatprep.subr.mxu0 0.0
    %74 = vmatpush1.msra.mxu0 %v53
    %75 = vmatprep.subr.mxu0 0.0
    %76 = vmatpush1.msra.mxu0 %v54
    %77 = vmatprep.subr.mxu0 0.0
    %78 = vmatpush1.msra.mxu0 %v55
    %79 = vmatprep.subr.mxu0 0.0
    %80 = vmatpush1.msra.mxu0 %v56
    %81 = vmatprep.subr.mxu0 0.0
    %82 = vmatpush1.msra.mxu0 %v57
    %83 = vmatprep.subr.mxu0 0.0
    %84 = vmatpush1.msra.mxu0 %v58
    %85 = vmatprep.subr.mxu0 0.0
    %86 = vmatpush1.msra.mxu0 %v59
    %87 = vmatprep.subr.mxu0 0.0
    %88 = vmatpush1.msra.mxu0 %v60
    %89 = vmatprep.subr.mxu0 0.0
    %90 = vmatpush1.msra.mxu0 %v61
    %91 = vmatprep.subr.mxu0 0.0
    %92 = vmatpush1.msra.mxu0 %v62
    %93 = vmatprep.subr.mxu0 0.0
    %94 = vmatpush1.msra.mxu0 %v63
    %95 = vmatprep.subr.mxu0 0.0
    %96 = vmatpush1.msra.mxu0 %v64
    %97 = vmatprep.subr.mxu0 0.0
    %98 = vmatpush1.msra.mxu0 0.0
    %99 = vmatprep.subr.mxu0 0.0
    %100 = vmatpush1.msra.mxu0 0.0
    %101 = vmatprep.subr.mxu0 0.0
    %102 = vmatpush1.msra.mxu0 0.0
    %103 = vmatprep.subr.mxu0 0.0
    %104 = vmatpush1.msra.mxu0 0.0
    %105 = vmatprep.subr.mxu0 0.0
    %106 = vmatpush1.msra.mxu0 0.0
    %107 = vmatprep.subr.mxu0 0.0
    %108 = vmatpush1.msra.mxu0 0.0
    %109 = vmatprep.subr.mxu0 0.0
    %110 = vmatpush1.msra.mxu0 0.0
    %111 = vmatprep.subr.mxu0 0.0
    %112 = vmatpush1.msra.mxu0 0.0
    %113 = vmatprep.subr.mxu0 0.0
    %114 = vmatpush1.msra.mxu0 0.0
    %115 = vmatprep.subr.mxu0 0.0
    %116 = vmatpush1.msra.mxu0 0.0
    %117 = vmatprep.subr.mxu0 0.0
    %118 = vmatpush1.msra.mxu0 0.0
    %119 = vmatprep.subr.mxu0 0.0
    %120 = vmatpush1.msra.mxu0 0.0
    %121 = vmatprep.subr.mxu0 0.0
    %122 = vmatpush1.msra.mxu0 0.0
    %123 = vmatprep.subr.mxu0 0.0
    %124 = vmatpush1.msra.mxu0 0.0
    %125 = vmatprep.subr.mxu0 0.0
    %126 = vmatpush1.msra.mxu0 0.0
    %127 = vmatprep.subr.mxu0 0.0
    %128 = vmatpush1.msra.mxu0 0.0
    %129 = vmatprep.mubr.f32.mxu0 0.0
    %130 = vmatmul.mubr.f32.gmra.mrb[0].mxu0 %v46
    %v131 = vpop.f32.mrb[0].mxu0
    %v132 = vadd.f32 0.0, %v131
    %v133 = vpop.f32.mrb[0].mxu0
    %134 = vmatprep.mubr.f32.mxu0 0.0
    %135 = vmatmul.mubr.f32.gmra.mrb[0].mxu0 %v47
    %v136 = vpop.f32.mrb[0].mxu0
    %v137 = vadd.f32 0.0, %v136
    %v138 = vpop.f32.mrb[0].mxu0
    %139 = vmatprep.mubr.f32.mxu0 0.0
    %140 = vmatmul.mubr.f32.gmra.mrb[0].mxu0 %v48
    %v141 = vpop.f32.mrb[0].mxu0
    %v142 = vadd.f32 0.0, %v141
    %v143 = vpop.f32.mrb[0].mxu0
    %144 = vdwg.mxu0
    %145 = vst [vmem:[#allocation5] sm:$0xff] %v132
    %146 = vst [vmem:[#allocation5 + $0x8] sm:$0xff] %v137
    %147 = vst [vmem:[#allocation5 + $0x10] sm:$0xff] %v142
    // Predicated region
    $region14: #{tpu_custom_call.1} parent=1 // pred_check
      _
    $region15: #{tpu_custom_call.1} parent=1 // pred_check_branch
      %149 = sbr.rel (0) target = $region17
    $region16: #{tpu_custom_call.1} parent=1 // pred_region
      %s151 = ssub.s32 384, 384
      %152 = vsyncadd [#allocation4], %s151
      %s153 = sshll.u32 [#allocation5], 4
      %s154 = int_to_ptr.vmem [resolvable:$true] %s153
      %159 = dma.vmem_to_hbm [thread:$0]  %s154, 384, %s2, [#allocation4], 128, 128, 8
    $region17: #{tpu_custom_call.1} parent=1 // pred_fallthru
      _
    // Predicated region
    $region18: #{tpu_custom_call.1} parent=1 // pred_check
      _
    $region19: #{tpu_custom_call.1} parent=1 // pred_check_branch
      %161 = sbr.rel (0) target = $region21
    $region20: #{tpu_custom_call.1} parent=1 // pred_region
      %162 = dma.done [#allocation4], 384
    $region21: #{tpu_custom_call.1} parent=1 // pred_fallthru
      _
    %163 = vsyncpa [#allocation3], 1
    %164 = vsyncpa [#allocation4], 1

</llo_original>
